<compile_context>
chip_gen: v5e
topology: v5e:2x2
jax: 0.10.0
libtpu: 0.0.40
codegen_flags: <defaults>
</compile_context>

<pallas_src>
import jax
import jax.numpy as jnp
import numpy as np
from jax.experimental import pallas as pl
from jax.experimental.pallas import tpu as pltpu

_EPS = 1e-12  # torch.nn.functional.normalize default eps


def _llh_kernel(x_ref, w_ref, inv_x_ref, b_ref, cs_ref, o_ref):
    # x_ref    : VMEM (tm, tk)  features tile (already MXU dtype, unnormalized)
    # w_ref    : VMEM (tk, tn)  weight tile, already [D, O] layout / MXU dtype
    # inv_x_ref: VMEM (tm, 1)   f32  1 / max(||x_row||, eps)
    # b_ref    : VMEM (1, tn)   f32  bias
    # cs_ref   : VMEM (1, tn)   f32  exp(logit_scale) / ||W_row||
    # o_ref    : VMEM (tm, tn)  f32  output tile (doubles as the accumulator)
    k = pl.program_id(2)
    nk = pl.num_programs(2)

    @pl.when(k == 0)
    def _():
        o_ref[...] = jnp.zeros_like(o_ref)

    # Pure-MXU inner loop: unnormalized partial matmul, f32 accumulation
    # directly into the resident f32 output tile (no scratch accumulator).
    o_ref[...] += jnp.dot(x_ref[...], w_ref[...],
                          preferred_element_type=jnp.float32)

    @pl.when(k == nk - 1)
    def _():
        # One fused epilogue per output tile:
        #   y = (acc * 1/||x_row|| + b) * (exp(logit_scale) / ||W_row||)
        o_ref[...] = (o_ref[...] * inv_x_ref[...] + b_ref[...]) * cs_ref[...]


def _round_up(v, m):
    return ((v + m - 1) // m) * m


def prepare_head_params(weight, bias, logit_scale, *, mxu_dtype=None):
    """One-time parameter prep. Hoist this out of the jitted step function so
    the [D, O] transpose / bf16 cast / head-norm fold is NOT redone per call.

    weight: [O, D] (torch.nn.Linear layout), bias: [O], logit_scale: scalar.
    Returns (w_t [D, O] in mxu_dtype, bias [1, O] f32, col_scale [1, O] f32).
    """
    if mxu_dtype is None:
        mxu_dtype = weight.dtype
    w32 = weight.astype(jnp.float32)
    # exp(logit_scale) / ||W_row||, always from f32 weights (matches
    # torch.norm(weight, dim=1) exactly even when the MXU runs in bf16).
    col_scale = (jnp.exp(jnp.asarray(logit_scale, jnp.float32)) *
                 jax.lax.rsqrt(jnp.sum(w32 * w32, axis=1)))            # (O,)
    w_t = weight.astype(mxu_dtype).T                                   # (D, O)
    b_row = bias.astype(jnp.float32).reshape(1, -1)                    # (1, O)
    return w_t, b_row, col_scale.reshape(1, -1)


def learnable_logit_head_prepared(x, w_t, b_row, col_scale, *,
                                  tm=None, tn=512, tk=512):
    """x: [B, D]; w_t/b_row/col_scale from prepare_head_params().
    Returns [B, O] float32."""
    B, D = x.shape
    D_w, O = w_t.shape
    assert D_w == D, f"weight D ({D_w}) != x D ({D})"
    mxu_dtype = w_t.dtype

    # Per-row inverse L2 norm in f32 (F.normalize(dim=1) with eps=1e-12):
    # 1/max(||x||, eps) == rsqrt(max(sum(x^2), eps^2)).
    x32 = x.astype(jnp.float32)
    inv_x = jax.lax.rsqrt(
        jnp.maximum(jnp.sum(x32 * x32, axis=1, keepdims=True),
                    jnp.float32(_EPS * _EPS)))                         # (B, 1)

    # Tile sizing: hardware-align, grow tm so the weight matrix streams as few
    # times as possible (once when B <= 1024), then pad to tile multiples.
    Bp, Dp, Op = _round_up(B, 8), _round_up(D, 128), _round_up(O, 128)
    if tm is None:
        tm = Bp if Bp <= 1024 else 512
    tm, tk, tn = min(tm, Bp), min(tk, Dp), min(tn, Op)
    Bp, Dp, Op = _round_up(Bp, tm), _round_up(Dp, tk), _round_up(Op, tn)

    x_p = jnp.pad(x.astype(mxu_dtype), ((0, Bp - B), (0, Dp - D)))
    w_p = jnp.pad(w_t, ((0, Dp - D), (0, Op - O)))
    inv_p = jnp.pad(inv_x, ((0, Bp - B), (0, 0)), constant_values=1.0)
    b_p = jnp.pad(b_row, ((0, 0), (0, Op - O)))
    # Padded columns get scale 1 (and zero acc / zero bias) -> exactly 0, no NaN.
    cs_p = jnp.pad(col_scale.astype(jnp.float32), ((0, 0), (0, Op - O)),
                   constant_values=1.0)

    grid = (Bp // tm, Op // tn, Dp // tk)

    in_itm = jnp.dtype(mxu_dtype).itemsize
    # Double-buffered x / W tiles + resident f32 output tile + tiny scale rows.
    vmem_est = (2 * (tm * tk + tk * tn) * in_itm
                + 2 * tm * tn * 4
                + 2 * (tm + 2 * tn) * 4)
    try:
        vmem_cap = pltpu.get_tpu_info().vmem_capacity_bytes   # 64 MiB v7x, 128 MiB v5e/v6e
    except Exception:
        vmem_cap = 64 * 1024 * 1024                           # v7x-safe fallback
    vmem_limit = int(min(max(2 * vmem_est, 32 * 1024 * 1024),
                         int(0.85 * vmem_cap)))

    cost = pl.CostEstimate(
        flops=2 * Bp * Dp * Op + 3 * Bp * Op,
        transcendentals=0,
        bytes_accessed=(Bp * Dp + Dp * Op) * in_itm + (Bp * Op + Bp + 2 * Op) * 4,
    )

    out_p = pl.pallas_call(
        _llh_kernel,
        out_shape=jax.ShapeDtypeStruct((Bp, Op), jnp.float32),
        grid=grid,
        in_specs=[
            pl.BlockSpec((tm, tk), lambda i, j, k: (i, k)),    # x
            pl.BlockSpec((tk, tn), lambda i, j, k: (k, j)),    # W^T  [D, O]
            pl.BlockSpec((tm, 1), lambda i, j, k: (i, 0)),     # 1/||x_row||
            pl.BlockSpec((1, tn), lambda i, j, k: (0, j)),     # bias
            pl.BlockSpec((1, tn), lambda i, j, k: (0, j)),     # exp(ls)/||W_row||
        ],
        out_specs=pl.BlockSpec((tm, tn), lambda i, j, k: (i, j)),
        compiler_params=pltpu.CompilerParams(
            dimension_semantics=("parallel", "parallel", "arbitrary"),
            vmem_limit_bytes=vmem_limit,
        ),
        cost_estimate=cost,
    )(x_p, w_p, inv_p, b_p, cs_p)

    return out_p[:B, :O]


def learnable_logit_head(x, weight, bias, logit_scale, *,
                         tm=None, tn=512, tk=512, mxu_dtype=None):
    """Convenience wrapper. x: [B, D], weight: [O, D], bias: [O],
    logit_scale: scalar. Pass mxu_dtype=jnp.bfloat16 for bf16 MXU inputs with
    f32 accumulation (recommended on v5e and for production sizes).
    In production, call prepare_head_params() once and reuse its outputs."""
    mxu_dtype = x.dtype if mxu_dtype is None else mxu_dtype
    w_t, b_row, col_scale = prepare_head_params(
        weight, bias, logit_scale, mxu_dtype=mxu_dtype)
    return learnable_logit_head_prepared(x, w_t, b_row, col_scale,
                                         tm=tm, tn=tn, tk=tk)


def _reference(x, weight, bias, logit_scale):
    xn = x / jnp.maximum(jnp.linalg.norm(x, axis=1, keepdims=True), _EPS)
    y = xn @ weight.T + bias[None, :]
    head_norms = jnp.linalg.norm(weight, axis=1)
    y = y / head_norms[None, :]
    return y * jnp.exp(logit_scale)


if __name__ == "__main__":
    B, D, O = 8, 32, 16

    key = jax.random.PRNGKey(0)
    kx, kw, kb = jax.random.split(key, 3)

    x = jax.random.normal(kx, (B, D), dtype=jnp.float32)
    bound = 1.0 / np.sqrt(D)                       # nn.Linear-style init
    weight = jax.random.uniform(kw, (O, D), jnp.float32, -bound, bound)
    bias = jax.random.uniform(kb, (O,), jnp.float32, -bound, bound)
    logit_scale = jnp.float32(np.log(1.0 / 0.07))  # init_learn_logit_scale

    ref = _reference(x, weight, bias, logit_scale)

    # f32 MXU path: tight tolerance.
    out = jax.block_until_ready(learnable_logit_head(x, weight, bias, logit_scale))
    np.testing.assert_allclose(np.asarray(out), np.asarray(ref), rtol=1e-5, atol=1e-5)

    # bf16 MXU path (production setting): bf16 streamed operands, f32
    # accumulation + f32 norms/scales, looser tolerance.
    out_bf16 = jax.block_until_ready(
        learnable_logit_head(x, weight, bias, logit_scale, mxu_dtype=jnp.bfloat16))
    np.testing.assert_allclose(np.asarray(out_bf16), np.asarray(ref), rtol=2e-2, atol=2e-2)

    print("KERNEL_OK")
</pallas_src>

<mosaic_0001>
module attributes {stable_mosaic.version = 11 : i64} {
  func.func @_llh_kernel(%arg0: i32, %arg1: i32, %arg2: i32, %arg3: memref<8x128xf32, #tpu.memory_space<vmem>>, %arg4: memref<128x128xf32, #tpu.memory_space<vmem>>, %arg5: memref<8x1xf32, #tpu.memory_space<vmem>>, %arg6: memref<1x128xf32, #tpu.memory_space<vmem>>, %arg7: memref<1x128xf32, #tpu.memory_space<vmem>>, %arg8: memref<8x128xf32, #tpu.memory_space<vmem>>) attributes {dimension_semantics = [#tpu.dimension_semantics<parallel>, #tpu.dimension_semantics<parallel>, #tpu.dimension_semantics<arbitrary>], iteration_bounds = array<i64: 1, 1, 1>, scalar_prefetch = 0 : i64, scratch_operands = 0 : i64, tpu.core_type = #tpu.core_type<tc>, window_params = [{transform_indices = @transform_0, window_bounds = array<i64: 8, 128>}, {transform_indices = @transform_1, window_bounds = array<i64: 128, 128>}, {transform_indices = @transform_2, window_bounds = array<i64: 8, 1>}, {transform_indices = @transform_3, window_bounds = array<i64: 1, 128>}, {transform_indices = @transform_4, window_bounds = array<i64: 1, 128>}, {transform_indices = @transform_5, window_bounds = array<i64: 8, 128>}]} {
    %c0_i32 = arith.constant 0 : i32
    %0 = arith.cmpi eq, %arg2, %c0_i32 : i32
    %1 = arith.extui %0 : i1 to i32
    %c0_i32_0 = arith.constant 0 : i32
    %2 = arith.cmpi ne, %1, %c0_i32_0 : i32
    scf.if %2 {
      %cst_10 = arith.constant 0.000000e+00 : f32
      %12 = vector.broadcast %cst_10 : f32 to vector<8x128xf32>
      %c0_11 = arith.constant 0 : index
      %c0_12 = arith.constant 0 : index
      %13 = vector.load %arg8[%c0_11, %c0_12] : memref<8x128xf32, #tpu.memory_space<vmem>>, vector<8x128xf32>
      tpu.vector_store %arg8[%c0_11, %c0_12], %12 {strides = array<i32>} : memref<8x128xf32, #tpu.memory_space<vmem>>, vector<8x128xf32>,
    } else {
    }
    %c0 = arith.constant 0 : index
    %c0_1 = arith.constant 0 : index
    %3 = vector.load %arg8[%c0, %c0_1] : memref<8x128xf32, #tpu.memory_space<vmem>>, vector<8x128xf32>
    %c0_2 = arith.constant 0 : index
    %c0_3 = arith.constant 0 : index
    %4 = vector.load %arg3[%c0_2, %c0_3] : memref<8x128xf32, #tpu.memory_space<vmem>>, vector<8x128xf32>
    %c0_4 = arith.constant 0 : index
    %c0_5 = arith.constant 0 : index
    %5 = vector.load %arg4[%c0_4, %c0_5] : memref<128x128xf32, #tpu.memory_space<vmem>>, vector<128x128xf32>
    %cst = arith.constant dense<0.000000e+00> : vector<8x128xf32>
    %6 = tpu.matmul %4, %5, %cst {dimension_numbers = #tpu.dot_dimension_numbers<[1], [0], [0], [1], [0, 0, 1, 1], [], []>} : vector<8x128xf32>, vector<128x128xf32>, vector<8x128xf32> -> vector<8x128xf32>
    %7 = arith.addf %3, %6 : vector<8x128xf32>
    %c0_6 = arith.constant 0 : index
    %c0_7 = arith.constant 0 : index
    %8 = vector.load %arg8[%c0_6, %c0_7] : memref<8x128xf32, #tpu.memory_space<vmem>>, vector<8x128xf32>
    tpu.vector_store %arg8[%c0_6, %c0_7], %7 {strides = array<i32>} : memref<8x128xf32, #tpu.memory_space<vmem>>, vector<8x128xf32>,
    %c0_i32_8 = arith.constant 0 : i32
    %9 = arith.cmpi eq, %arg2, %c0_i32_8 : i32
    %10 = arith.extui %9 : i1 to i32
    %c0_i32_9 = arith.constant 0 : i32
    %11 = arith.cmpi ne, %10, %c0_i32_9 : i32
    scf.if %11 {
      %c0_10 = arith.constant 0 : index
      %c0_11 = arith.constant 0 : index
      %12 = vector.load %arg8[%c0_10, %c0_11] : memref<8x128xf32, #tpu.memory_space<vmem>>, vector<8x128xf32>
      %c0_12 = arith.constant 0 : index
      %c0_13 = arith.constant 0 : index
      %13 = vector.load %arg5[%c0_12, %c0_13] : memref<8x1xf32, #tpu.memory_space<vmem>>, vector<8x1xf32>
      %14 = vector.broadcast %13 : vector<8x1xf32> to vector<8x128xf32>
      %15 = arith.mulf %12, %14 : vector<8x128xf32>
      %c0_14 = arith.constant 0 : index
      %c0_15 = arith.constant 0 : index
      %16 = vector.load %arg6[%c0_14, %c0_15] : memref<1x128xf32, #tpu.memory_space<vmem>>, vector<1x128xf32>
      %17 = vector.broadcast %16 : vector<1x128xf32> to vector<8x128xf32>
      %18 = arith.addf %15, %17 : vector<8x128xf32>
      %c0_16 = arith.constant 0 : index
      %c0_17 = arith.constant 0 : index
      %19 = vector.load %arg7[%c0_16, %c0_17] : memref<1x128xf32, #tpu.memory_space<vmem>>, vector<1x128xf32>
      %20 = vector.broadcast %19 : vector<1x128xf32> to vector<8x128xf32>
      %21 = arith.mulf %18, %20 : vector<8x128xf32>
      %c0_18 = arith.constant 0 : index
      %c0_19 = arith.constant 0 : index
      %22 = vector.load %arg8[%c0_18, %c0_19] : memref<8x128xf32, #tpu.memory_space<vmem>>, vector<8x128xf32>
      tpu.vector_store %arg8[%c0_18, %c0_19], %21 {strides = array<i32>} : memref<8x128xf32, #tpu.memory_space<vmem>>, vector<8x128xf32>,
    } else {
    }
    return
  }
  func.func @transform_0(%arg0: i32, %arg1: i32, %arg2: i32) -> (i32, i32) {
    %c0_i32 = arith.constant 0 : i32
    return %arg0, %arg2 : i32, i32
  }
  func.func @transform_1(%arg0: i32, %arg1: i32, %arg2: i32) -> (i32, i32) {
    %c0_i32 = arith.constant 0 : i32
    return %arg2, %arg1 : i32, i32
  }
  func.func @transform_2(%arg0: i32, %arg1: i32, %arg2: i32) -> (i32, i32) {
    %c0_i32 = arith.constant 0 : i32
    %c0_i32_0 = arith.constant 0 : i32
    return %arg0, %c0_i32 : i32, i32
  }
  func.func @transform_3(%arg0: i32, %arg1: i32, %arg2: i32) -> (i32, i32) {
    %c0_i32 = arith.constant 0 : i32
    %c0_i32_0 = arith.constant 0 : i32
    return %c0_i32, %arg1 : i32, i32
  }
  func.func @transform_4(%arg0: i32, %arg1: i32, %arg2: i32) -> (i32, i32) {
    %c0_i32 = arith.constant 0 : i32
    %c0_i32_0 = arith.constant 0 : i32
    return %c0_i32, %arg1 : i32, i32
  }
  func.func @transform_5(%arg0: i32, %arg1: i32, %arg2: i32) -> (i32, i32) {
    %c0_i32 = arith.constant 0 : i32
    return %arg0, %arg1 : i32, i32
  }
}

</mosaic_0001>

<llo_original>
// kernel: tpu_custom_call.1
$region0: #{tpu_custom_call.1}
  #allocation0 [shape = 'u32[]', space=smem, size = 0x4, offset = 0x4, fixed_abs, tag = 'smem constant byte address 0x4 - core index']
  #allocation1 [shape = 'u32[72,128]{1,0:T(1,128)}', space=vmem, size = 0x9000, scoped, tag = 'internal scratch']
  %s0 = inlined_call_operand.vmem [shape: f32[8,128], index: 0, kind: input, shape index: {}]
  %s1 = inlined_call_operand.hbm [shape: f32[128,128], index: 1, kind: input, shape index: {}]
  %s2 = inlined_call_operand.vmem [shape: f32[8,1], index: 2, kind: input, shape index: {}]
  %s3 = inlined_call_operand.vmem [shape: f32[1,128], index: 3, kind: input, shape index: {}]
  %s4 = inlined_call_operand.vmem [shape: f32[1,128], index: 4, kind: input, shape index: {}]
  %s5 = inlined_call_operand.hbm [shape: f32[8,128], index: 5, kind: output, shape index: {}]
  %s6 = sld [smem:[#allocation0]]
  $region42: #{tpu_custom_call.1} parent=0
    _
  %s8 = ssub.s32 1, %s6
  %s9 = scalar_select 0, %s8, %s6
  $region1: #{tpu_custom_call.1} parent=0
    #allocation2 [shape = 'u8[65536]{0}', space=vmem, size = 0x10000, scoped, tag = 'input window, operand 1, single buffered']
    #allocation3 [shape = 's32[1]{0}', space=sflag, size = 0x4, scoped, tag = 'scoped memory for tpu_custom_call.1']
    #allocation4 [shape = 's32[1]{0}', space=sflag, size = 0x4, scoped, tag = 'scoped memory for tpu_custom_call.1']
    #allocation5 [shape = 'u8[4096]{0}', space=vmem, size = 0x1000, scoped, tag = 'output window, operand 0, single buffered']
    %10 = vsyncpa [#allocation3], 0
    %11 = vsyncpa [#allocation4], 0
    // Predicated region
    $region2: #{tpu_custom_call.1} parent=1 // pred_check
      _
    $region3: #{tpu_custom_call.1} parent=1 // pred_check_branch
      %13 = sbr.rel (0) target = $region5
    $region4: #{tpu_custom_call.1} parent=1 // pred_region
      _
    $region5: #{tpu_custom_call.1} parent=1 // pred_fallthru
      _
    // Predicated region
    $region6: #{tpu_custom_call.1} parent=1 // pred_check
      _
    $region7: #{tpu_custom_call.1} parent=1 // pred_check_branch
      %15 = sbr.rel (0) target = $region9
    $region8: #{tpu_custom_call.1} parent=1 // pred_region
      %17 = vsyncadd [#allocation3], 0
      %s18 = sshll.u32 %s1, 4
      %s19 = int_to_ptr.hbm [resolvable:$true] %s18
      %s20 = sshll.u32 [#allocation2], 4
      %s21 = int_to_ptr.vmem [resolvable:$true] %s20
      %26 = dma.hbm_to_vmem [thread:$0]  %s19, 2048, %s21, [#allocation3], 128, 128, 8
    $region9: #{tpu_custom_call.1} parent=1 // pred_fallthru
      _
    // Predicated region
    $region10: #{tpu_custom_call.1} parent=1 // pred_check
      _
    $region11: #{tpu_custom_call.1} parent=1 // pred_check_branch
      %28 = sbr.rel (0) target = $region13
    $region12: #{tpu_custom_call.1} parent=1 // pred_region
      _
    $region13: #{tpu_custom_call.1} parent=1 // pred_fallthru
      _
    // Predicated region
    $region14: #{tpu_custom_call.1} parent=1 // pred_check
      _
    $region15: #{tpu_custom_call.1} parent=1 // pred_check_branch
      %30 = sbr.rel (0) target = $region17
    $region16: #{tpu_custom_call.1} parent=1 // pred_region
      _
    $region17: #{tpu_custom_call.1} parent=1 // pred_fallthru
      _
    // Predicated region
    $region18: #{tpu_custom_call.1} parent=1 // pred_check
      _
    $region19: #{tpu_custom_call.1} parent=1 // pred_check_branch
      %32 = sbr.rel (0) target = $region21
    $region20: #{tpu_custom_call.1} parent=1 // pred_region
      _
    $region21: #{tpu_custom_call.1} parent=1 // pred_fallthru
      _
    // Predicated region
    $region22: #{tpu_custom_call.1} parent=1 // pred_check
      _
    $region23: #{tpu_custom_call.1} parent=1 // pred_check_branch
      %34 = sbr.rel (0) target = $region25
    $region24: #{tpu_custom_call.1} parent=1 // pred_region
      %36 = dma.done [#allocation3], 2048
    $region25: #{tpu_custom_call.1} parent=1 // pred_fallthru
      _
    %p37 = scmp.eq.s32.totalorder 0, 0
    // Predicated region
    $region26: #{tpu_custom_call.1} parent=1 // pred_check
      %p38 = pneg %p37
    $region27: #{tpu_custom_call.1} parent=1 // pred_check_branch
      %40 = sbr.rel (%p38) target = $region29
    $region28: #{tpu_custom_call.1} parent=1 // pred_region
      %41 = vst [vmem:[#allocation5] sm:$0xff] 0.0
    $region29: #{tpu_custom_call.1} parent=1 // pred_fallthru
      _
    %v42 = vld [vmem:[#allocation5] sm:$0xff]
    %v43 = vld [vmem:[%s0] sm:$0xff]
    %v44 = vld [vmem:[#allocation2] sm:$0xff]
    %v45 = vld [vmem:[#allocation2 + $0x8] sm:$0xff]
    %v46 = vld [vmem:[#allocation2 + $0x10] sm:$0xff]
    %v47 = vld [vmem:[#allocation2 + $0x18] sm:$0xff]
    %v48 = vld [vmem:[#allocation2 + $0x20] sm:$0xff]
    %v49 = vld [vmem:[#allocation2 + $0x28] sm:$0xff]
    %v50 = vld [vmem:[#allocation2 + $0x30] sm:$0xff]
    %v51 = vld [vmem:[#allocation2 + $0x38] sm:$0xff]
    %v52 = vld [vmem:[#allocation2 + $0x40] sm:$0xff]
    %v53 = vld [vmem:[#allocation2 + $0x48] sm:$0xff]
    %v54 = vld [vmem:[#allocation2 + $0x50] sm:$0xff]
    %v55 = vld [vmem:[#allocation2 + $0x58] sm:$0xff]
    %v56 = vld [vmem:[#allocation2 + $0x60] sm:$0xff]
    %v57 = vld [vmem:[#allocation2 + $0x68] sm:$0xff]
    %v58 = vld [vmem:[#allocation2 + $0x70] sm:$0xff]
    %v59 = vld [vmem:[#allocation2 + $0x78] sm:$0xff]
    %60 = vmatpush.msra.mxu0 %v59
    %61 = vmatpush.msra.mxu0 %v58
    %62 = vmatpush.msra.mxu0 %v57
    %63 = vmatpush.msra.mxu0 %v56
    %64 = vmatpush.msra.mxu0 %v55
    %65 = vmatpush.msra.mxu0 %v54
    %66 = vmatpush.msra.mxu0 %v53
    %67 = vmatpush.msra.mxu0 %v52
    %68 = vmatpush.msra.mxu0 %v51
    %69 = vmatpush.msra.mxu0 %v50
    %70 = vmatpush.msra.mxu0 %v49
    %71 = vmatpush.msra.mxu0 %v48
    %72 = vmatpush.msra.mxu0 %v47
    %73 = vmatpush.msra.mxu0 %v46
    %74 = vmatpush.msra.mxu0 %v45
    %75 = vmatpush.msra.mxu0 %v44
    %76 = vmatmul.f32.gmra.mxu0 %v43
    %v77 = vpop.f32.mrf.mxu0
    %v78 = vadd.f32 0.0, %v77
    %79 = vdwg.mxu0
    %v80 = vadd.f32 %v42, %v78
    %81 = vst [vmem:[#allocation5] sm:$0xff] %v80
    // Predicated region
    $region30: #{tpu_custom_call.1} parent=1 // pred_check
      %p82 = pneg %p37
    $region31: #{tpu_custom_call.1} parent=1 // pred_check_branch
      %84 = sbr.rel (%p82) target = $region33
    $region32: #{tpu_custom_call.1} parent=1 // pred_region
      %v85 = vld [vmem:[#allocation5] sm:$0xff]
      %v86 = vld [vmem:[%s2] sm:$0xff]
      %88 = vset.pattern.permute.xlu0 0
      %89 = vperm.xlu0 %88, %v86
      %v90 = vpop.permute.xlu0 %89
      %v92 = vmul.f32 %v85, %v90
      %v93 = vld [vmem:[%s3] sm:$0x1]
      %v95 = vperm.slane %v93, 0
      %v97 = vadd.f32 %v92, %v95
      %v98 = vld [vmem:[%s4] sm:$0x1]
      %v100 = vperm.slane %v98, 0
      %v102 = vmul.f32 %v97, %v100
      %103 = vst [vmem:[#allocation5] sm:$0xff] %v102
    $region33: #{tpu_custom_call.1} parent=1 // pred_fallthru
      _
    // Predicated region
    $region34: #{tpu_custom_call.1} parent=1 // pred_check
      _
    $region35: #{tpu_custom_call.1} parent=1 // pred_check_branch
      %105 = sbr.rel (0) target = $region37
    $region36: #{tpu_custom_call.1} parent=1 // pred_region
      %107 = vsyncadd [#allocation4], 0
      %s109 = sshll.u32 [#allocation5], 4
      %s110 = int_to_ptr.vmem [resolvable:$true] %s109
      %s111 = sshll.u32 %s5, 4
      %s112 = int_to_ptr.hbm [resolvable:$true] %s111
      %114 = dma.vmem_to_hbm [thread:$0]  %s110, 128, %s112, [#allocation4]
    $region37: #{tpu_custom_call.1} parent=1 // pred_fallthru
      _
    // Predicated region
    $region38: #{tpu_custom_call.1} parent=1 // pred_check
      _
    $region39: #{tpu_custom_call.1} parent=1 // pred_check_branch
      %116 = sbr.rel (0) target = $region41
    $region40: #{tpu_custom_call.1} parent=1 // pred_region
      %118 = dma.done [#allocation4], 128
    $region41: #{tpu_custom_call.1} parent=1 // pred_fallthru
      _
    %119 = vsyncpa [#allocation3], 1
    %120 = vsyncpa [#allocation4], 1

</llo_original>
